<compile_context>
chip_gen: v6e
topology: v6e:2x2x1
jax: 0.10.0
libtpu: 0.0.40
codegen_flags: <defaults>
</compile_context>

<pallas_src>
import functools

import jax
import jax.numpy as jnp
from jax.experimental import pallas as pl
from jax.experimental.pallas import tpu as pltpu


def _round_up(x, m):
    return ((x + m - 1) // m) * m


def _mlp2_kernel(x_ref, w_ref, b_ref, o_ref, *, total_rows, mask_tail,
                 neg_slope=0.01):
    # x: (TB, n_mlp) VMEM (streamed), w: (2, n_mlp) VMEM (resident),
    # b: (2,) SMEM scalars, o: (2, TB) VMEM (lane-dense: batch along lanes).
    tb = o_ref.shape[1]

    # Cast after load so x may be streamed as bf16 (no-op when already f32).
    x = x_ref[...].astype(jnp.float32)

    # Both logits in one NT matmul: (2, n_mlp) x (TB, n_mlp)^T -> (2, TB).
    # MXU is otherwise idle; this yields the batch-along-lanes orientation
    # directly (no in-kernel transpose of the results needed).
    z = jax.lax.dot_general(
        w_ref[...], x,
        dimension_numbers=(((1,), (1,)), ((), ())),
        preferred_element_type=jnp.float32,
    )

    z0 = z[0:1, :] + b_ref[0]          # (1, TB)
    z1 = z[1:2, :] + b_ref[1]          # (1, TB)

    # LeakyReLU (PyTorch default negative_slope = 0.01).
    lz0 = jnp.where(z0 >= 0, z0, neg_slope * z0)
    lz1 = jnp.where(z1 >= 0, z1, neg_slope * z1)

    # softmax over 2 classes == sigmoid of the logit difference (exact identity).
    d = lz0 - lz1

    if mask_tail:
        # Partial last tile: zero the garbage columns so exp() stays finite.
        # (Their stores are dropped anyway; this just keeps values clean.)
        col = pl.program_id(0) * tb + jax.lax.broadcasted_iota(
            jnp.int32, (1, tb), 1)
        d = jnp.where(col < total_rows, d, 0.0)

    # Exact sigmoid (kernel is memory-bound; pl.reciprocal(approx=True) is an
    # option if a ~1e-3 accuracy budget is acceptable).
    p0 = 1.0 / (1.0 + jnp.exp(-d))     # (1, TB)
    p1 = 1.0 - p0

    o_ref[...] = jnp.concatenate([p0, p1], axis=0).astype(o_ref.dtype)


def mlp2_forward(mlp_in, weight, bias, *, tb=2048):
    """mlp_in: (B, n_mlp) f32 (or bf16); weight: (2, n_mlp) f32; bias: (2,) f32.

    Returns softmax(leaky_relu(mlp_in @ weight.T + bias), axis=1) of shape (B, 2).
    """
    B, n_mlp = mlp_in.shape
    itemsize = jnp.dtype(mlp_in.dtype).itemsize

    # --- Row-tile size ------------------------------------------------------
    TB = int(tb)
    # (a) VMEM budget: double-buffered x tile <= ~24 MiB (safe on v7x 64 MiB).
    max_tb_vmem = max(128, (24 * 1024 * 1024) // (2 * n_mlp * itemsize))
    TB = min(TB, max_tb_vmem)
    # (b) Prefer >= 2 grid steps when the batch allows (v7x has 2 TensorCores).
    if B > 128:
        TB = min(TB, _round_up((B + 1) // 2, 128))
    if TB >= B:
        TB = B                                  # single full block (no alignment rule)
        grid = (1,)
    else:
        TB = max(128, (TB // 128) * 128)        # lane-dense out block: multiple of 128
        grid = (pl.cdiv(B, TB),)

    # --- Cost hint for XLA's scheduler --------------------------------------
    cost = pl.CostEstimate(
        flops=4 * B * n_mlp,                    # 2 logits: 2*K MACs per row
        transcendentals=B,                      # one exp per row
        bytes_accessed=B * n_mlp * itemsize + 2 * n_mlp * 4 + B * 2 * 4,
    )

    kernel = functools.partial(
        _mlp2_kernel, total_rows=B, mask_tail=(B % TB != 0))

    out_t = pl.pallas_call(
        kernel,
        out_shape=jax.ShapeDtypeStruct((2, B), jnp.float32),
        grid=grid,
        in_specs=[
            # x streams tile-by-tile (double-buffered by the Pallas pipeline).
            pl.BlockSpec((TB, n_mlp), lambda i: (i, 0)),
            # weight: constant index_map -> stays VMEM-resident across the grid.
            pl.BlockSpec((2, n_mlp), lambda i: (0, 0)),
            # bias: two scalars in SMEM (no VMEM DMA stream for it).
            pl.BlockSpec(memory_space=pltpu.MemorySpace.SMEM),
        ],
        # Lane-dense output: batch along lanes, 2 classes along sublanes.
        out_specs=pl.BlockSpec((2, TB), lambda i: (0, i)),
        compiler_params=pltpu.CompilerParams(
            dimension_semantics=("parallel",),
            vmem_limit_bytes=48 * 1024 * 1024,  # > v5e 16 MiB / v6e,v7x 32 MiB defaults
        ),
        cost_estimate=cost,
    )(mlp_in, weight, bias)

    # Tiny (2, B) -> (B, 2) transpose in the wrapper (2*B*4 bytes, negligible
    # next to the B*n_mlp*itemsize read of x).
    return out_t.T


def _reference(mlp_in, weight, bias):
    z = mlp_in.astype(jnp.float32) @ weight.T + bias
    z = jnp.where(z >= 0, z, 0.01 * z)
    return jax.nn.softmax(z, axis=1)


if __name__ == "__main__":
    key = jax.random.PRNGKey(0)
    k_x, k_w, k_b, k_x2 = jax.random.split(key, 4)

    B, n_mlp = 8, 32

    # Deterministic parameter init (mimic PyTorch Linear uniform(-1/sqrt(fan_in), ...)).
    bound = 1.0 / jnp.sqrt(jnp.float32(n_mlp))
    weight = jax.random.uniform(k_w, (2, n_mlp), jnp.float32, -bound, bound)
    bias = jax.random.uniform(k_b, (2,), jnp.float32, -bound, bound)

    # Small case (single grid step, full-dim blocks).
    mlp_in = jax.random.normal(k_x, (B, n_mlp), jnp.float32)
    out = jax.block_until_ready(mlp2_forward(mlp_in, weight, bias))
    ref = _reference(mlp_in, weight, bias)
    assert out.shape == (B, 2)
    assert jnp.allclose(out, ref, atol=1e-5, rtol=1e-5), "mismatch vs reference (small)"

    # Gridded case with a ragged tail (exercises grid > 1 and the partial tile
    # without any wrapper-side padding).
    B2 = 300
    mlp_in2 = jax.random.normal(k_x2, (B2, n_mlp), jnp.float32)
    out2 = jax.block_until_ready(mlp2_forward(mlp_in2, weight, bias, tb=128))
    ref2 = _reference(mlp_in2, weight, bias)
    assert out2.shape == (B2, 2)
    assert jnp.allclose(out2, ref2, atol=1e-5, rtol=1e-5), "mismatch vs reference (gridded)"
    assert bool(jnp.all(jnp.isfinite(out2))), "non-finite values leaked from partial tile"

    print("KERNEL_OK")
</pallas_src>

<mosaic_0001>
module attributes {stable_mosaic.version = 11 : i64} {
  func.func @_mlp2_kernel(%arg0: i32, %arg1: memref<8x32xf32, #tpu.memory_space<vmem>>, %arg2: memref<2x32xf32, #tpu.memory_space<vmem>>, %arg3: memref<2xf32, #tpu.memory_space<smem>>, %arg4: memref<2x8xf32, #tpu.memory_space<vmem>>) attributes {dimension_semantics = [#tpu.dimension_semantics<parallel>], iteration_bounds = array<i64: 1>, scalar_prefetch = 0 : i64, scratch_operands = 0 : i64, tpu.core_type = #tpu.core_type<tc>, window_params = [{transform_indices = @transform_0, window_bounds = array<i64: 8, 32>}, {pipeline_mode = #tpu.pipeline_mode<synchronous>, transform_indices = @transform_1, window_bounds = array<i64: 2, 32>}, {transform_indices = @transform_2, window_bounds = array<i64: 2>}, {transform_indices = @transform_3, window_bounds = array<i64: 2, 8>}]} {
    %c0 = arith.constant 0 : index
    %c0_0 = arith.constant 0 : index
    %0 = vector.load %arg1[%c0, %c0_0] : memref<8x32xf32, #tpu.memory_space<vmem>>, vector<8x32xf32>
    %c0_1 = arith.constant 0 : index
    %c0_2 = arith.constant 0 : index
    %1 = vector.load %arg2[%c0_1, %c0_2] : memref<2x32xf32, #tpu.memory_space<vmem>>, vector<2x32xf32>
    %cst = arith.constant dense<0.000000e+00> : vector<2x8xf32>
    %2 = tpu.matmul %1, %0, %cst {dimension_numbers = #tpu.dot_dimension_numbers<[1], [1], [0], [0], [0, 0, 1, 0], [], []>} : vector<2x32xf32>, vector<8x32xf32>, vector<2x8xf32> -> vector<2x8xf32>
    %3 = vector.extract_strided_slice %2 {offsets = [0, 0], sizes = [1, 8], strides = [1, 1]} : vector<2x8xf32> to vector<1x8xf32>
    %c0_3 = arith.constant 0 : index
    %4 = memref.load %arg3[%c0_3] : memref<2xf32, #tpu.memory_space<smem>>
    %5 = vector.broadcast %4 : f32 to vector<1x8xf32>
    %6 = arith.addf %3, %5 : vector<1x8xf32>
    %7 = vector.extract_strided_slice %2 {offsets = [1, 0], sizes = [1, 8], strides = [1, 1]} : vector<2x8xf32> to vector<1x8xf32>
    %c1 = arith.constant 1 : index
    %8 = memref.load %arg3[%c1] : memref<2xf32, #tpu.memory_space<smem>>
    %9 = vector.broadcast %8 : f32 to vector<1x8xf32>
    %10 = arith.addf %7, %9 : vector<1x8xf32>
    %cst_4 = arith.constant 0.000000e+00 : f32
    %11 = vector.broadcast %cst_4 : f32 to vector<1x8xf32>
    %12 = arith.cmpf oge, %6, %11 : vector<1x8xf32>
    %cst_5 = arith.constant 0.00999999977 : f32
    %13 = vector.broadcast %cst_5 : f32 to vector<1x8xf32>
    %14 = arith.mulf %13, %6 : vector<1x8xf32>
    %15 = arith.select %12, %6, %14 : vector<1x8xi1>, vector<1x8xf32>
    %cst_6 = arith.constant 0.000000e+00 : f32
    %16 = vector.broadcast %cst_6 : f32 to vector<1x8xf32>
    %17 = arith.cmpf oge, %10, %16 : vector<1x8xf32>
    %cst_7 = arith.constant 0.00999999977 : f32
    %18 = vector.broadcast %cst_7 : f32 to vector<1x8xf32>
    %19 = arith.mulf %18, %10 : vector<1x8xf32>
    %20 = arith.select %17, %10, %19 : vector<1x8xi1>, vector<1x8xf32>
    %21 = arith.subf %15, %20 : vector<1x8xf32>
    %cst_8 = arith.constant 0.000000e+00 : f32
    %22 = vector.broadcast %cst_8 : f32 to vector<1x8xf32>
    %23 = arith.subf %22, %21 : vector<1x8xf32>
    %24 = math.exp %23 : vector<1x8xf32>
    %cst_9 = arith.constant 1.000000e+00 : f32
    %25 = vector.broadcast %cst_9 : f32 to vector<1x8xf32>
    %26 = arith.addf %25, %24 : vector<1x8xf32>
    %cst_10 = arith.constant 1.000000e+00 : f32
    %27 = vector.broadcast %cst_10 : f32 to vector<1x8xf32>
    %28 = arith.divf %27, %26 : vector<1x8xf32>
    %cst_11 = arith.constant 1.000000e+00 : f32
    %29 = vector.broadcast %cst_11 : f32 to vector<1x8xf32>
    %30 = arith.subf %29, %28 : vector<1x8xf32>
    %31 = tpu.concatenate %28, %30 in 0 : vector<1x8xf32>, vector<1x8xf32> -> vector<2x8xf32>
    %c0_12 = arith.constant 0 : index
    %c0_13 = arith.constant 0 : index
    %32 = vector.load %arg4[%c0_12, %c0_13] : memref<2x8xf32, #tpu.memory_space<vmem>>, vector<2x8xf32>
    tpu.vector_store %arg4[%c0_12, %c0_13], %31 {strides = array<i32>} : memref<2x8xf32, #tpu.memory_space<vmem>>, vector<2x8xf32>,
    return
  }
  func.func @transform_0(%arg0: i32) -> (i32, i32) {
    %c0_i32 = arith.constant 0 : i32
    %c0_i32_0 = arith.constant 0 : i32
    return %arg0, %c0_i32 : i32, i32
  }
  func.func @transform_1(%arg0: i32) -> (i32, i32) {
    %c0_i32 = arith.constant 0 : i32
    %c0_i32_0 = arith.constant 0 : i32
    %c0_i32_1 = arith.constant 0 : i32
    return %c0_i32, %c0_i32_0 : i32, i32
  }
  func.func @transform_2(%arg0: i32) -> i32 {
    %c0_i32 = arith.constant 0 : i32
    %c0_i32_0 = arith.constant 0 : i32
    return %c0_i32 : i32
  }
  func.func @transform_3(%arg0: i32) -> (i32, i32) {
    %c0_i32 = arith.constant 0 : i32
    %c0_i32_0 = arith.constant 0 : i32
    return %c0_i32, %arg0 : i32, i32
  }
}

</mosaic_0001>

<llo_original>
// kernel: tpu_custom_call.1
$region0: #{tpu_custom_call.1}
  #allocation0 [shape = 'u32[]', space=smem, size = 0x4, offset = 0x4, fixed_abs, tag = 'smem constant byte address 0x4 - core index']
  #allocation1 [shape = 'u32[144,128]{1,0:T(1,128)}', space=vmem, size = 0x12000, scoped, tag = 'internal scratch']
  %s0 = inlined_call_operand.hbm [shape: f32[8,32], index: 0, kind: input, shape index: {}]
  %s1 = inlined_call_operand.hbm [shape: f32[2,32], index: 1, kind: input, shape index: {}]
  %s2 = inlined_call_operand.vmem [shape: f32[2], index: 2, kind: input, shape index: {}]
  %s3 = inlined_call_operand.hbm [shape: f32[2,8], index: 3, kind: output, shape index: {}]
  %s4 = sld [smem:[#allocation0]]
  $region34: #{tpu_custom_call.1} parent=0
    _
  %s6 = ssub.s32 1, %s4
  %s7 = scalar_select 0, %s6, %s4
  $region1: #{tpu_custom_call.1} parent=0
    #allocation2 [shape = 'u8[4096]{0}', space=vmem, size = 0x1000, scoped, tag = 'input window, operand 0, single buffered']
    #allocation3 [shape = 's32[1]{0}', space=sflag, size = 0x4, scoped, tag = 'scoped memory for tpu_custom_call.1']
    #allocation4 [shape = 's32[1]{0}', space=sflag, size = 0x4, scoped, tag = 'scoped memory for tpu_custom_call.1']
    #allocation5 [shape = 's32[1]{0}', space=sflag, size = 0x4, scoped, tag = 'scoped memory for tpu_custom_call.1']
    #allocation6 [shape = 'u8[1024]{0}', space=vmem, size = 0x400, scoped, tag = 'input window, operand 1, single buffered']
    #allocation7 [shape = 's32[1]{0}', space=sflag, size = 0x4, scoped, tag = 'scoped memory for tpu_custom_call.1']
    #allocation8 [shape = 'u8[512]{0}', space=smem, size = 0x200, scoped, tag = 'input window, operand 2, single buffered']
    #allocation9 [shape = 'u8[1024]{0}', space=vmem, size = 0x400, scoped, tag = 'output window, operand 0, single buffered']
    %8 = vsyncpa [#allocation3], 0
    %9 = vsyncpa [#allocation7], 0
    %10 = vsyncpa [#allocation5], 0
    %11 = vsyncpa [#allocation4], 0
    // Predicated region
    $region2: #{tpu_custom_call.1} parent=1 // pred_check
      _
    $region3: #{tpu_custom_call.1} parent=1 // pred_check_branch
      %13 = sbr.rel (0) target = $region5
    $region4: #{tpu_custom_call.1} parent=1 // pred_region
      %s15 = ssub.s32 128, 128
      %16 = vsyncadd [#allocation3], %s15
      %s18 = sshll.u32 [#allocation2], 4
      %s19 = int_to_ptr.vmem [resolvable:$true] %s18
      %21 = dma.hbm_to_vmem [thread:$0]  %s0, 128, %s19, [#allocation3]
    $region5: #{tpu_custom_call.1} parent=1 // pred_fallthru
      _
    // Predicated region
    $region6: #{tpu_custom_call.1} parent=1 // pred_check
      _
    $region7: #{tpu_custom_call.1} parent=1 // pred_check_branch
      %23 = sbr.rel (0) target = $region9
    $region8: #{tpu_custom_call.1} parent=1 // pred_region
      %s25 = ssub.s32 32, 32
      %26 = vsyncadd [#allocation7], %s25
      %s28 = sshll.u32 [#allocation6], 4
      %s29 = int_to_ptr.vmem [resolvable:$true] %s28
      %31 = dma.hbm_to_vmem [thread:$0]  %s1, 32, %s29, [#allocation7]
    $region9: #{tpu_custom_call.1} parent=1 // pred_fallthru
      _
    // Predicated region
    $region10: #{tpu_custom_call.1} parent=1 // pred_check
      _
    $region11: #{tpu_custom_call.1} parent=1 // pred_check_branch
      %33 = sbr.rel (0) target = $region13
    $region12: #{tpu_custom_call.1} parent=1 // pred_region
      %s35 = ssub.s32 16, 16
      %36 = vsyncadd [#allocation5], %s35
      %s38 = sshll.u32 %s2, 4
      %s39 = int_to_ptr.vmem [resolvable:$true] %s38
      %41 = dma.vmem_to_smem %s39, 16, [#allocation8], [#allocation5]
    $region13: #{tpu_custom_call.1} parent=1 // pred_fallthru
      _
    // Predicated region
    $region14: #{tpu_custom_call.1} parent=1 // pred_check
      _
    $region15: #{tpu_custom_call.1} parent=1 // pred_check_branch
      %43 = sbr.rel (0) target = $region17
    $region16: #{tpu_custom_call.1} parent=1 // pred_region
      %44 = dma.done [#allocation3], 128
    $region17: #{tpu_custom_call.1} parent=1 // pred_fallthru
      _
    // Predicated region
    $region18: #{tpu_custom_call.1} parent=1 // pred_check
      _
    $region19: #{tpu_custom_call.1} parent=1 // pred_check_branch
      %46 = sbr.rel (0) target = $region21
    $region20: #{tpu_custom_call.1} parent=1 // pred_region
      %47 = dma.done [#allocation7], 32
    $region21: #{tpu_custom_call.1} parent=1 // pred_fallthru
      _
    // Predicated region
    $region22: #{tpu_custom_call.1} parent=1 // pred_check
      _
    $region23: #{tpu_custom_call.1} parent=1 // pred_check_branch
      %49 = sbr.rel (0) target = $region25
    $region24: #{tpu_custom_call.1} parent=1 // pred_region
      %50 = dma.done [#allocation5], 16
    $region25: #{tpu_custom_call.1} parent=1 // pred_fallthru
      _
    %51 = sfence
    %v52 = vld [vmem:[#allocation2] sm:$0xff]
    %v53 = vld [vmem:[#allocation6] sm:$0x3]
    %vm54 = vcmask 261120
    %v56 = vsel %vm54, %v53, 0
    %v59 = vsel %vm54, %v52, 0
    %61 = vmatprep.subr.mxu0 0.0
    %62 = vmatpush1.xpose.msra.mxu0 0.0
    %63 = vmatprep.subr.mxu0 0.0
    %64 = vmatpush1.xpose.msra.mxu0 0.0
    %65 = vmatprep.subr.mxu0 0.0
    %66 = vmatpush1.xpose.msra.mxu0 0.0
    %67 = vmatprep.subr.mxu0 0.0
    %68 = vmatpush1.xpose.msra.mxu0 0.0
    %69 = vmatprep.subr.mxu0 0.0
    %70 = vmatpush1.xpose.msra.mxu0 0.0
    %71 = vmatprep.subr.mxu0 0.0
    %72 = vmatpush1.xpose.msra.mxu0 0.0
    %73 = vmatprep.subr.mxu0 0.0
    %74 = vmatpush1.xpose.msra.mxu0 0.0
    %75 = vmatprep.subr.mxu0 0.0
    %76 = vmatpush1.xpose.msra.mxu0 0.0
    %77 = vmatprep.subr.mxu0 0.0
    %78 = vmatpush1.xpose.msra.mxu0 0.0
    %79 = vmatprep.subr.mxu0 0.0
    %80 = vmatpush1.xpose.msra.mxu0 0.0
    %81 = vmatprep.subr.mxu0 0.0
    %82 = vmatpush1.xpose.msra.mxu0 0.0
    %83 = vmatprep.subr.mxu0 0.0
    %84 = vmatpush1.xpose.msra.mxu0 0.0
    %85 = vmatprep.subr.mxu0 0.0
    %86 = vmatpush1.xpose.msra.mxu0 0.0
    %87 = vmatprep.subr.mxu0 0.0
    %88 = vmatpush1.xpose.msra.mxu0 0.0
    %89 = vmatprep.subr.mxu0 0.0
    %90 = vmatpush1.xpose.msra.mxu0 0.0
    %91 = vmatprep.subr.mxu0 0.0
    %92 = vmatpush1.xpose.msra.mxu0 %v59
    %93 = vmatprep.subr.mxu0 0.0
    %94 = vmatpush2.xpose.msra.mxu0 0.0
    %95 = vmatprep.subr.mxu0 0.0
    %96 = vmatpush2.xpose.msra.mxu0 0.0
    %97 = vmatprep.subr.mxu0 0.0
    %98 = vmatpush2.xpose.msra.mxu0 0.0
    %99 = vmatprep.subr.mxu0 0.0
    %100 = vmatpush2.xpose.msra.mxu0 0.0
    %101 = vmatprep.subr.mxu0 0.0
    %102 = vmatpush2.xpose.msra.mxu0 0.0
    %103 = vmatprep.subr.mxu0 0.0
    %104 = vmatpush2.xpose.msra.mxu0 0.0
    %105 = vmatprep.subr.mxu0 0.0
    %106 = vmatpush2.xpose.msra.mxu0 0.0
    %107 = vmatprep.subr.mxu0 0.0
    %108 = vmatpush2.xpose.msra.mxu0 0.0
    %109 = vmatprep.subr.mxu0 0.0
    %110 = vmatpush2.xpose.msra.mxu0 0.0
    %111 = vmatprep.subr.mxu0 0.0
    %112 = vmatpush2.xpose.msra.mxu0 0.0
    %113 = vmatprep.subr.mxu0 0.0
    %114 = vmatpush2.xpose.msra.mxu0 0.0
    %115 = vmatprep.subr.mxu0 0.0
    %116 = vmatpush2.xpose.msra.mxu0 0.0
    %117 = vmatprep.subr.mxu0 0.0
    %118 = vmatpush2.xpose.msra.mxu0 0.0
    %119 = vmatprep.subr.mxu0 0.0
    %120 = vmatpush2.xpose.msra.mxu0 0.0
    %121 = vmatprep.subr.mxu0 0.0
    %122 = vmatpush2.xpose.msra.mxu0 0.0
    %123 = vmatprep.subr.mxu0 0.0
    %124 = vmatpush2.xpose.msra.mxu0 0.0
    %125 = vmatprep.mubr.f32.mxu0 0.0
    %126 = vmatmul.mubr.f32.gmra.mxu0 %v56
    %v127 = vpop.f32.mrf.mxu0
    %v128 = vadd.f32 0.0, %v127
    %v129 = vpop.f32.mrf.mxu0
    %130 = vdwg.mxu0
    %s131 = sld [smem:[#allocation8]]
    %v132 = vstv %s131
    %v133 = vadd.f32 %v128, %v132
    %s134 = sld [smem:[#allocation8 + $0x1]]
    %v135 = vstv %s134
    %v136 = vadd.f32 %v128, %v135
    %vm137 = vcmp.ge.f32.partialorder %v133, 0.0
    %v138 = vmul.f32 %v133, 0.01
    %v139 = vsel %vm137, %v133, %v138
    %vm140 = vcmp.ge.f32.partialorder %v136, 0.0
    %v141 = vmul.f32 %v136, 0.01
    %v142 = vsel %vm140, %v136, %v141
    %v144 = vrot.slane %v142, 1
    %v146 = vsub.f32 %v139, %v144
    %v147 = vsub.f32 0.0, %v146
    %v148 = vmul.f32 %v147, 1.442695
    %v149 = vpow.pop %v148
    %v150 = vadd.f32 %v149, 1.0
    %v151 = vrcp.pop %v150
    %v152 = vmul.f32 1.0, %v151
    %v153 = vsub.f32 1.0, %v152
    %v155 = vrot.slane %v153, 7
    %vm157 = vcmask 1040384
    %v158 = vsel %vm157, %v152, %v155
    %vm159 = vcmask 58368
    %160 = vst.msk [vmem:[#allocation9] sm:$0x3] %vm159, %v158
    // Predicated region
    $region26: #{tpu_custom_call.1} parent=1 // pred_check
      _
    $region27: #{tpu_custom_call.1} parent=1 // pred_check_branch
      %162 = sbr.rel (0) target = $region29
    $region28: #{tpu_custom_call.1} parent=1 // pred_region
      %s164 = ssub.s32 32, 32
      %165 = vsyncadd [#allocation4], %s164
      %s167 = sshll.u32 [#allocation9], 4
      %s168 = int_to_ptr.vmem [resolvable:$true] %s167
      %170 = dma.vmem_to_hbm [thread:$0]  %s168, 32, %s3, [#allocation4]
    $region29: #{tpu_custom_call.1} parent=1 // pred_fallthru
      _
    // Predicated region
    $region30: #{tpu_custom_call.1} parent=1 // pred_check
      _
    $region31: #{tpu_custom_call.1} parent=1 // pred_check_branch
      %172 = sbr.rel (0) target = $region33
    $region32: #{tpu_custom_call.1} parent=1 // pred_region
      %173 = dma.done [#allocation4], 32
    $region33: #{tpu_custom_call.1} parent=1 // pred_fallthru
      _
    %174 = vsyncpa [#allocation3], 1
    %175 = vsyncpa [#allocation7], 1
    %176 = vsyncpa [#allocation4], 1
    %177 = vsyncpa [#allocation5], 1

</llo_original>
